<compile_context>
chip_gen: v6e
topology: v6e:2x2x1
jax: 0.10.0
libtpu: 0.0.40
codegen_flags: <defaults>
</compile_context>

<pallas_src>
import functools

import numpy as np
import jax
import jax.numpy as jnp
from jax import lax
from jax.experimental import pallas as pl
from jax.experimental.pallas import tpu as pltpu

_EPS = 1e-5


# ----------------------------- Pallas kernel ----------------------------------

def basic_block_kernel(x_ref, w1_ref, w2_ref, w3_ref, w4_ref, w5_ref,
                       bnp_ref, mask_ref, o_ref, *, w_stride):
    """Fused conv1..conv5 + BN(+relu) + identity shortcut, channel-major layout.

    x_ref   : (Cin,  M)   activations, M = N*H*W on the lane axis
    w1_ref  : (C1,  Cin)  conv1 1x1
    w2_ref  : (C2,  C1)   conv2 1x1
    w3_ref  : (C1, 3*C2)  conv3 (1,3) taps [w-1 | w | w+1] stacked on K
    w4_ref  : (C1, 3*C1)  conv4 (3,1) taps [h-1 | h | h+1] stacked on K
    w5_ref  : (Cout, C1)  conv5 1x1
    bnp_ref : (Cmax, 10)  cols 0..4 = gamma_1..5, cols 5..9 = beta_1..5
    mask_ref: (4, M)      {0,1} masks: [w>0, w<W-1, h>0, h<H-1]
    o_ref   : (Cout, M)
    """
    _, M = x_ref.shape
    C1 = w1_ref.shape[0]
    C2 = w2_ref.shape[0]
    Cout = w5_ref.shape[0]

    x = x_ref[...]                       # (Cin, M), lane-dense
    bnp = bnp_ref[...]                   # packed gamma/beta table
    masks = mask_ref[...]                # constant boundary masks
    inv_m = 1.0 / M

    def bn_relu(y, stage, c, relu=True):
        # One-pass training-mode BN over the pixel (lane) axis, folded affine.
        mean = jnp.sum(y, axis=1, keepdims=True) * inv_m            # (c, 1)
        msq = jnp.sum(y * y, axis=1, keepdims=True) * inv_m         # (c, 1)
        var = jnp.maximum(msq - mean * mean, 0.0)
        g = bnp[0:c, stage:stage + 1]                               # (c, 1)
        be = bnp[0:c, 5 + stage:6 + stage]                          # (c, 1)
        scale = g * lax.rsqrt(var + _EPS)                           # EUP rsqrt
        shift = be - mean * scale
        out = y * scale + shift
        return jnp.maximum(out, 0.0) if relu else out

    def mxu(w, a):
        return jnp.dot(w, a, preferred_element_type=jnp.float32)

    # conv1 / conv2 (1x1). Conv biases omitted: exactly cancelled by BN mean.
    t = bn_relu(mxu(w1_ref[...], x), 0, C1)
    t = bn_relu(mxu(w2_ref[...], t), 1, C2)

    # conv3: (1,3) kernel, padding (0,1) -> taps {w-1, w, w+1}; one fused dot.
    t_wm1 = jnp.roll(t, 1, axis=1) * masks[0:1, :]     # value at w-1 (0 at w==0)
    t_wp1 = jnp.roll(t, -1, axis=1) * masks[1:2, :]    # value at w+1 (0 at w==W-1)
    slab = jnp.concatenate([t_wm1, t, t_wp1], axis=0)  # (3*C2, M)
    t = bn_relu(mxu(w3_ref[...], slab), 2, C1)

    # conv4: (3,1) kernel, padding (1,0) -> taps {h-1, h, h+1} (shift by W).
    t_hm1 = jnp.roll(t, w_stride, axis=1) * masks[2:3, :]
    t_hp1 = jnp.roll(t, -w_stride, axis=1) * masks[3:4, :]
    slab = jnp.concatenate([t_hm1, t, t_hp1], axis=0)  # (3*C1, M)
    t = bn_relu(mxu(w4_ref[...], slab), 3, C1)

    # conv5 (1x1) + bn5 (no relu), identity shortcut, final relu.
    y = bn_relu(mxu(w5_ref[...], t), 4, Cout, relu=False)
    o_ref[...] = jnp.maximum(y + x, 0.0)               # lane-dense (Cout, M) store


def basic_block_pallas(x_nchw, kp):
    N, Cin, H, W = x_nchw.shape
    M = N * H * W
    C1 = kp["w1"].shape[0]
    C2 = kp["w2"].shape[0]
    Cout = kp["w5"].shape[0]

    # Channel-major, pixel-minor slab: x_cm[c, (n*H+h)*W + w] = x[n, c, h, w]
    x_cm = x_nchw.transpose(1, 0, 2, 3).reshape(Cin, M)

    # Constant spatial boundary masks for the (1,3)/(3,1) conv taps.
    m = np.arange(M)
    w_idx = m % W
    h_idx = (m // W) % H
    masks = jnp.asarray(
        np.stack([w_idx > 0, w_idx < W - 1, h_idx > 0, h_idx < H - 1])
        .astype(np.float32))                                   # (4, M)

    flops = 2 * M * (Cin * C1 + C1 * C2 + 3 * C2 * C1 + 3 * C1 * C1 + C1 * Cout)
    bytes_accessed = 4 * (Cin * M + Cout * M
                          + kp["w1"].size + kp["w2"].size + kp["w3"].size
                          + kp["w4"].size + kp["w5"].size
                          + kp["bnp"].size + masks.size)
    transcendentals = C1 * 3 + C2 + Cout                       # rsqrt per BN channel

    vmem = pl.BlockSpec(memory_space=pltpu.MemorySpace.VMEM)
    out_cm = pl.pallas_call(
        functools.partial(basic_block_kernel, w_stride=W),
        out_shape=jax.ShapeDtypeStruct((Cout, M), jnp.float32),
        in_specs=[vmem] * 8,
        out_specs=vmem,
        compiler_params=pltpu.CompilerParams(
            vmem_limit_bytes=32 * 1024 * 1024),
        cost_estimate=pl.CostEstimate(flops=flops,
                                      transcendentals=transcendentals,
                                      bytes_accessed=bytes_accessed),
    )(x_cm, kp["w1"], kp["w2"], kp["w3"], kp["w4"], kp["w5"], kp["bnp"], masks)

    return out_cm.reshape(Cout, N, H, W).transpose(1, 0, 2, 3)   # back to NCHW


# ----------------------- parameter construction (deterministic) ----------------

def make_params(key, in_channels, out_channels):
    assert in_channels == out_channels, "identity-shortcut configuration"
    reduction = 0.5                                  # stride==1, in==out
    C1 = int(in_channels * reduction)                # conv1 / conv3 / conv4 out
    C2 = int(in_channels * reduction * 0.5)          # conv2 out
    Cout = out_channels

    ks = jax.random.split(key, 20)

    def u(k, shape, scale=0.3):
        return jax.random.uniform(k, shape, jnp.float32, -scale, scale)

    # PyTorch-layout conv weights (O, I, kH, kW) + biases (biases only used by ref).
    tp = {}
    tp["W1"], tp["b1"] = u(ks[0], (C1, in_channels, 1, 1)), u(ks[1], (C1,))
    tp["W2"], tp["b2"] = u(ks[2], (C2, C1, 1, 1)), u(ks[3], (C2,))
    tp["W3"], tp["b3"] = u(ks[4], (C1, C2, 1, 3)), u(ks[5], (C1,))
    tp["W4"], tp["b4"] = u(ks[6], (C1, C1, 3, 1)), u(ks[7], (C1,))
    tp["W5"], tp["b5"] = u(ks[8], (Cout, C1, 1, 1)), u(ks[9], (Cout,))
    for i, (name, c) in enumerate([("1", C1), ("2", C2), ("3", C1), ("4", C1), ("5", Cout)]):
        tp["g" + name] = 1.0 + 0.1 * u(ks[10 + 2 * i], (c,))
        tp["be" + name] = 0.1 * u(ks[11 + 2 * i], (c,))

    # Kernel-layout params: OIHW weights used as-is (channel-major layout),
    # 3-tap convs pre-fused into one weight slab, gamma/beta packed into one table.
    cmax = max(C1, C2, Cout)
    bnp = jnp.zeros((cmax, 10), jnp.float32)
    for i, c in enumerate([C1, C2, C1, C1, Cout]):
        bnp = bnp.at[:c, i].set(tp["g" + str(i + 1)])
        bnp = bnp.at[:c, 5 + i].set(tp["be" + str(i + 1)])

    kp = {
        "w1": tp["W1"][:, :, 0, 0],                                          # (C1, Cin)
        "w2": tp["W2"][:, :, 0, 0],                                          # (C2, C1)
        "w3": jnp.concatenate([tp["W3"][:, :, 0, k] for k in range(3)], 1),  # (C1, 3*C2)
        "w4": jnp.concatenate([tp["W4"][:, :, k, 0] for k in range(3)], 1),  # (C1, 3*C1)
        "w5": tp["W5"][:, :, 0, 0],                                          # (Cout, C1)
        "bnp": bnp,                                                          # (Cmax, 10)
    }
    return tp, kp


# ----------------------- pure-JAX reference (PyTorch NCHW semantics) -----------

def reference_forward(x_nchw, tp):
    def conv(x, w, b, pad):
        y = lax.conv_general_dilated(
            x, w, (1, 1), ((pad[0], pad[0]), (pad[1], pad[1])),
            dimension_numbers=("NCHW", "OIHW", "NCHW"))
        return y + b[None, :, None, None]

    def bn(x, g, be):
        m = x.mean(axis=(0, 2, 3), keepdims=True)
        v = ((x - m) ** 2).mean(axis=(0, 2, 3), keepdims=True)
        return g[None, :, None, None] * (x - m) / jnp.sqrt(v + _EPS) + be[None, :, None, None]

    r = jax.nn.relu
    o = r(bn(conv(x_nchw, tp["W1"], tp["b1"], (0, 0)), tp["g1"], tp["be1"]))
    o = r(bn(conv(o, tp["W2"], tp["b2"], (0, 0)), tp["g2"], tp["be2"]))
    o = r(bn(conv(o, tp["W3"], tp["b3"], (0, 1)), tp["g3"], tp["be3"]))
    o = r(bn(conv(o, tp["W4"], tp["b4"], (1, 0)), tp["g4"], tp["be4"]))
    o = bn(conv(o, tp["W5"], tp["b5"], (0, 0)), tp["g5"], tp["be5"])
    o = o + x_nchw                                    # identity shortcut
    return r(o)


if __name__ == "__main__":
    key = jax.random.PRNGKey(0)
    k_x, k_p = jax.random.split(key)

    N, C, H, W = 2, 32, 8, 8                          # NCHW; M = N*H*W = 128 lanes
    x_nchw = jax.random.normal(k_x, (N, C, H, W), jnp.float32)
    torch_params, kernel_params = make_params(k_p, in_channels=C, out_channels=C)

    out = jax.jit(basic_block_pallas)(x_nchw, kernel_params)
    out = jax.block_until_ready(out)

    ref = reference_forward(x_nchw, torch_params)
    assert out.shape == ref.shape == (N, C, H, W)
    assert jnp.allclose(out, ref, atol=1e-3, rtol=1e-3), (
        float(jnp.max(jnp.abs(out - ref))))

    print("KERNEL_OK")
</pallas_src>

<mosaic_0001>
module attributes {stable_mosaic.version = 11 : i64} {
  func.func @basic_block_kernel(%arg0: memref<32x128xf32, #tpu.memory_space<vmem>>, %arg1: memref<16x32xf32, #tpu.memory_space<vmem>>, %arg2: memref<8x16xf32, #tpu.memory_space<vmem>>, %arg3: memref<16x24xf32, #tpu.memory_space<vmem>>, %arg4: memref<16x48xf32, #tpu.memory_space<vmem>>, %arg5: memref<32x16xf32, #tpu.memory_space<vmem>>, %arg6: memref<32x10xf32, #tpu.memory_space<vmem>>, %arg7: memref<4x128xf32, #tpu.memory_space<vmem>>, %arg8: memref<32x128xf32, #tpu.memory_space<vmem>>) attributes {dimension_semantics = [], scalar_prefetch = 0 : i64, scratch_operands = 0 : i64, tpu.core_type = #tpu.core_type<tc>} {
    %c0 = arith.constant 0 : index
    %c0_0 = arith.constant 0 : index
    %0 = vector.load %arg0[%c0, %c0_0] : memref<32x128xf32, #tpu.memory_space<vmem>>, vector<32x128xf32>
    %c0_1 = arith.constant 0 : index
    %c0_2 = arith.constant 0 : index
    %1 = vector.load %arg6[%c0_1, %c0_2] : memref<32x10xf32, #tpu.memory_space<vmem>>, vector<32x10xf32>
    %c0_3 = arith.constant 0 : index
    %c0_4 = arith.constant 0 : index
    %2 = vector.load %arg7[%c0_3, %c0_4] : memref<4x128xf32, #tpu.memory_space<vmem>>, vector<4x128xf32>
    %c0_5 = arith.constant 0 : index
    %c0_6 = arith.constant 0 : index
    %3 = vector.load %arg1[%c0_5, %c0_6] : memref<16x32xf32, #tpu.memory_space<vmem>>, vector<16x32xf32>
    %cst = arith.constant dense<0.000000e+00> : vector<16x128xf32>
    %4 = tpu.matmul %3, %0, %cst {dimension_numbers = #tpu.dot_dimension_numbers<[1], [0], [0], [1], [0, 0, 1, 1], [], []>} : vector<16x32xf32>, vector<32x128xf32>, vector<16x128xf32> -> vector<16x128xf32>
    %cst_7 = arith.constant dense<0.000000e+00> : vector<16xf32>
    %5 = vector.multi_reduction <add>, %4, %cst_7 [1] : vector<16x128xf32> to vector<16xf32>
    %6 = vector.shape_cast %5 : vector<16xf32> to vector<16x1xf32>
    %cst_8 = arith.constant 7.812500e-03 : f32
    %7 = vector.broadcast %cst_8 : f32 to vector<16x1xf32>
    %8 = arith.mulf %6, %7 : vector<16x1xf32>
    %9 = arith.mulf %4, %4 : vector<16x128xf32>
    %cst_9 = arith.constant dense<0.000000e+00> : vector<16xf32>
    %10 = vector.multi_reduction <add>, %9, %cst_9 [1] : vector<16x128xf32> to vector<16xf32>
    %11 = vector.shape_cast %10 : vector<16xf32> to vector<16x1xf32>
    %cst_10 = arith.constant 7.812500e-03 : f32
    %12 = vector.broadcast %cst_10 : f32 to vector<16x1xf32>
    %13 = arith.mulf %11, %12 : vector<16x1xf32>
    %14 = arith.mulf %8, %8 : vector<16x1xf32>
    %15 = arith.subf %13, %14 : vector<16x1xf32>
    %cst_11 = arith.constant 0.000000e+00 : f32
    %16 = vector.broadcast %cst_11 : f32 to vector<16x1xf32>
    %17 = arith.maximumf %15, %16 : vector<16x1xf32>
    %18 = vector.extract_strided_slice %1 {offsets = [0, 0], sizes = [16, 1], strides = [1, 1]} : vector<32x10xf32> to vector<16x1xf32>
    %19 = vector.extract_strided_slice %1 {offsets = [0, 5], sizes = [16, 1], strides = [1, 1]} : vector<32x10xf32> to vector<16x1xf32>
    %cst_12 = arith.constant 9.99999974E-6 : f32
    %20 = vector.broadcast %cst_12 : f32 to vector<16x1xf32>
    %21 = arith.addf %17, %20 : vector<16x1xf32>
    %22 = math.rsqrt %21 : vector<16x1xf32>
    %23 = arith.mulf %18, %22 : vector<16x1xf32>
    %24 = arith.mulf %8, %23 : vector<16x1xf32>
    %25 = arith.subf %19, %24 : vector<16x1xf32>
    %26 = vector.broadcast %23 : vector<16x1xf32> to vector<16x128xf32>
    %27 = arith.mulf %4, %26 : vector<16x128xf32>
    %28 = vector.broadcast %25 : vector<16x1xf32> to vector<16x128xf32>
    %29 = arith.addf %27, %28 : vector<16x128xf32>
    %cst_13 = arith.constant 0.000000e+00 : f32
    %30 = vector.broadcast %cst_13 : f32 to vector<16x128xf32>
    %31 = arith.maximumf %29, %30 : vector<16x128xf32>
    %c0_14 = arith.constant 0 : index
    %c0_15 = arith.constant 0 : index
    %32 = vector.load %arg2[%c0_14, %c0_15] : memref<8x16xf32, #tpu.memory_space<vmem>>, vector<8x16xf32>
    %cst_16 = arith.constant dense<0.000000e+00> : vector<8x128xf32>
    %33 = tpu.matmul %32, %31, %cst_16 {dimension_numbers = #tpu.dot_dimension_numbers<[1], [0], [0], [1], [0, 0, 1, 1], [], []>} : vector<8x16xf32>, vector<16x128xf32>, vector<8x128xf32> -> vector<8x128xf32>
    %cst_17 = arith.constant dense<0.000000e+00> : vector<8xf32>
    %34 = vector.multi_reduction <add>, %33, %cst_17 [1] : vector<8x128xf32> to vector<8xf32>
    %35 = vector.shape_cast %34 : vector<8xf32> to vector<8x1xf32>
    %cst_18 = arith.constant 7.812500e-03 : f32
    %36 = vector.broadcast %cst_18 : f32 to vector<8x1xf32>
    %37 = arith.mulf %35, %36 : vector<8x1xf32>
    %38 = arith.mulf %33, %33 : vector<8x128xf32>
    %cst_19 = arith.constant dense<0.000000e+00> : vector<8xf32>
    %39 = vector.multi_reduction <add>, %38, %cst_19 [1] : vector<8x128xf32> to vector<8xf32>
    %40 = vector.shape_cast %39 : vector<8xf32> to vector<8x1xf32>
    %cst_20 = arith.constant 7.812500e-03 : f32
    %41 = vector.broadcast %cst_20 : f32 to vector<8x1xf32>
    %42 = arith.mulf %40, %41 : vector<8x1xf32>
    %43 = arith.mulf %37, %37 : vector<8x1xf32>
    %44 = arith.subf %42, %43 : vector<8x1xf32>
    %cst_21 = arith.constant 0.000000e+00 : f32
    %45 = vector.broadcast %cst_21 : f32 to vector<8x1xf32>
    %46 = arith.maximumf %44, %45 : vector<8x1xf32>
    %47 = vector.extract_strided_slice %1 {offsets = [0, 1], sizes = [8, 1], strides = [1, 1]} : vector<32x10xf32> to vector<8x1xf32>
    %48 = vector.extract_strided_slice %1 {offsets = [0, 6], sizes = [8, 1], strides = [1, 1]} : vector<32x10xf32> to vector<8x1xf32>
    %cst_22 = arith.constant 9.99999974E-6 : f32
    %49 = vector.broadcast %cst_22 : f32 to vector<8x1xf32>
    %50 = arith.addf %46, %49 : vector<8x1xf32>
    %51 = math.rsqrt %50 : vector<8x1xf32>
    %52 = arith.mulf %47, %51 : vector<8x1xf32>
    %53 = arith.mulf %37, %52 : vector<8x1xf32>
    %54 = arith.subf %48, %53 : vector<8x1xf32>
    %55 = vector.broadcast %52 : vector<8x1xf32> to vector<8x128xf32>
    %56 = arith.mulf %33, %55 : vector<8x128xf32>
    %57 = vector.broadcast %54 : vector<8x1xf32> to vector<8x128xf32>
    %58 = arith.addf %56, %57 : vector<8x128xf32>
    %cst_23 = arith.constant 0.000000e+00 : f32
    %59 = vector.broadcast %cst_23 : f32 to vector<8x128xf32>
    %60 = arith.maximumf %58, %59 : vector<8x128xf32>
    %61 = vector.extract_strided_slice %60 {offsets = [0, 127], sizes = [8, 1], strides = [1, 1]} : vector<8x128xf32> to vector<8x1xf32>
    %62 = vector.extract_strided_slice %60 {offsets = [0, 0], sizes = [8, 127], strides = [1, 1]} : vector<8x128xf32> to vector<8x127xf32>
    %63 = tpu.concatenate %61, %62 in 1 : vector<8x1xf32>, vector<8x127xf32> -> vector<8x128xf32>
    %64 = vector.extract_strided_slice %2 {offsets = [0, 0], sizes = [1, 128], strides = [1, 1]} : vector<4x128xf32> to vector<1x128xf32>
    %65 = vector.broadcast %64 : vector<1x128xf32> to vector<8x128xf32>
    %66 = arith.mulf %63, %65 : vector<8x128xf32>
    %67 = vector.extract_strided_slice %60 {offsets = [0, 1], sizes = [8, 127], strides = [1, 1]} : vector<8x128xf32> to vector<8x127xf32>
    %68 = vector.extract_strided_slice %60 {offsets = [0, 0], sizes = [8, 1], strides = [1, 1]} : vector<8x128xf32> to vector<8x1xf32>
    %69 = tpu.concatenate %67, %68 in 1 : vector<8x127xf32>, vector<8x1xf32> -> vector<8x128xf32>
    %70 = vector.extract_strided_slice %2 {offsets = [1, 0], sizes = [1, 128], strides = [1, 1]} : vector<4x128xf32> to vector<1x128xf32>
    %71 = vector.broadcast %70 : vector<1x128xf32> to vector<8x128xf32>
    %72 = arith.mulf %69, %71 : vector<8x128xf32>
    %73 = tpu.concatenate %66, %60, %72 in 0 : vector<8x128xf32>, vector<8x128xf32>, vector<8x128xf32> -> vector<24x128xf32>
    %c0_24 = arith.constant 0 : index
    %c0_25 = arith.constant 0 : index
    %74 = vector.load %arg3[%c0_24, %c0_25] : memref<16x24xf32, #tpu.memory_space<vmem>>, vector<16x24xf32>
    %cst_26 = arith.constant dense<0.000000e+00> : vector<16x128xf32>
    %75 = tpu.matmul %74, %73, %cst_26 {dimension_numbers = #tpu.dot_dimension_numbers<[1], [0], [0], [1], [0, 0, 1, 1], [], []>} : vector<16x24xf32>, vector<24x128xf32>, vector<16x128xf32> -> vector<16x128xf32>
    %cst_27 = arith.constant dense<0.000000e+00> : vector<16xf32>
    %76 = vector.multi_reduction <add>, %75, %cst_27 [1] : vector<16x128xf32> to vector<16xf32>
    %77 = vector.shape_cast %76 : vector<16xf32> to vector<16x1xf32>
    %cst_28 = arith.constant 7.812500e-03 : f32
    %78 = vector.broadcast %cst_28 : f32 to vector<16x1xf32>
    %79 = arith.mulf %77, %78 : vector<16x1xf32>
    %80 = arith.mulf %75, %75 : vector<16x128xf32>
    %cst_29 = arith.constant dense<0.000000e+00> : vector<16xf32>
    %81 = vector.multi_reduction <add>, %80, %cst_29 [1] : vector<16x128xf32> to vector<16xf32>
    %82 = vector.shape_cast %81 : vector<16xf32> to vector<16x1xf32>
    %cst_30 = arith.constant 7.812500e-03 : f32
    %83 = vector.broadcast %cst_30 : f32 to vector<16x1xf32>
    %84 = arith.mulf %82, %83 : vector<16x1xf32>
    %85 = arith.mulf %79, %79 : vector<16x1xf32>
    %86 = arith.subf %84, %85 : vector<16x1xf32>
    %cst_31 = arith.constant 0.000000e+00 : f32
    %87 = vector.broadcast %cst_31 : f32 to vector<16x1xf32>
    %88 = arith.maximumf %86, %87 : vector<16x1xf32>
    %89 = vector.extract_strided_slice %1 {offsets = [0, 2], sizes = [16, 1], strides = [1, 1]} : vector<32x10xf32> to vector<16x1xf32>
    %90 = vector.extract_strided_slice %1 {offsets = [0, 7], sizes = [16, 1], strides = [1, 1]} : vector<32x10xf32> to vector<16x1xf32>
    %cst_32 = arith.constant 9.99999974E-6 : f32
    %91 = vector.broadcast %cst_32 : f32 to vector<16x1xf32>
    %92 = arith.addf %88, %91 : vector<16x1xf32>
    %93 = math.rsqrt %92 : vector<16x1xf32>
    %94 = arith.mulf %89, %93 : vector<16x1xf32>
    %95 = arith.mulf %79, %94 : vector<16x1xf32>
    %96 = arith.subf %90, %95 : vector<16x1xf32>
    %97 = vector.broadcast %94 : vector<16x1xf32> to vector<16x128xf32>
    %98 = arith.mulf %75, %97 : vector<16x128xf32>
    %99 = vector.broadcast %96 : vector<16x1xf32> to vector<16x128xf32>
    %100 = arith.addf %98, %99 : vector<16x128xf32>
    %cst_33 = arith.constant 0.000000e+00 : f32
    %101 = vector.broadcast %cst_33 : f32 to vector<16x128xf32>
    %102 = arith.maximumf %100, %101 : vector<16x128xf32>
    %103 = vector.extract_strided_slice %102 {offsets = [0, 120], sizes = [16, 8], strides = [1, 1]} : vector<16x128xf32> to vector<16x8xf32>
    %104 = vector.extract_strided_slice %102 {offsets = [0, 0], sizes = [16, 120], strides = [1, 1]} : vector<16x128xf32> to vector<16x120xf32>
    %105 = tpu.concatenate %103, %104 in 1 : vector<16x8xf32>, vector<16x120xf32> -> vector<16x128xf32>
    %106 = vector.extract_strided_slice %2 {offsets = [2, 0], sizes = [1, 128], strides = [1, 1]} : vector<4x128xf32> to vector<1x128xf32>
    %107 = vector.broadcast %106 : vector<1x128xf32> to vector<16x128xf32>
    %108 = arith.mulf %105, %107 : vector<16x128xf32>
    %109 = vector.extract_strided_slice %102 {offsets = [0, 8], sizes = [16, 120], strides = [1, 1]} : vector<16x128xf32> to vector<16x120xf32>
    %110 = vector.extract_strided_slice %102 {offsets = [0, 0], sizes = [16, 8], strides = [1, 1]} : vector<16x128xf32> to vector<16x8xf32>
    %111 = tpu.concatenate %109, %110 in 1 : vector<16x120xf32>, vector<16x8xf32> -> vector<16x128xf32>
    %112 = vector.extract_strided_slice %2 {offsets = [3, 0], sizes = [1, 128], strides = [1, 1]} : vector<4x128xf32> to vector<1x128xf32>
    %113 = vector.broadcast %112 : vector<1x128xf32> to vector<16x128xf32>
    %114 = arith.mulf %111, %113 : vector<16x128xf32>
    %115 = tpu.concatenate %108, %102, %114 in 0 : vector<16x128xf32>, vector<16x128xf32>, vector<16x128xf32> -> vector<48x128xf32>
    %c0_34 = arith.constant 0 : index
    %c0_35 = arith.constant 0 : index
    %116 = vector.load %arg4[%c0_34, %c0_35] : memref<16x48xf32, #tpu.memory_space<vmem>>, vector<16x48xf32>
    %cst_36 = arith.constant dense<0.000000e+00> : vector<16x128xf32>
    %117 = tpu.matmul %116, %115, %cst_36 {dimension_numbers = #tpu.dot_dimension_numbers<[1], [0], [0], [1], [0, 0, 1, 1], [], []>} : vector<16x48xf32>, vector<48x128xf32>, vector<16x128xf32> -> vector<16x128xf32>
    %cst_37 = arith.constant dense<0.000000e+00> : vector<16xf32>
    %118 = vector.multi_reduction <add>, %117, %cst_37 [1] : vector<16x128xf32> to vector<16xf32>
    %119 = vector.shape_cast %118 : vector<16xf32> to vector<16x1xf32>
    %cst_38 = arith.constant 7.812500e-03 : f32
    %120 = vector.broadcast %cst_38 : f32 to vector<16x1xf32>
    %121 = arith.mulf %119, %120 : vector<16x1xf32>
    %122 = arith.mulf %117, %117 : vector<16x128xf32>
    %cst_39 = arith.constant dense<0.000000e+00> : vector<16xf32>
    %123 = vector.multi_reduction <add>, %122, %cst_39 [1] : vector<16x128xf32> to vector<16xf32>
    %124 = vector.shape_cast %123 : vector<16xf32> to vector<16x1xf32>
    %cst_40 = arith.constant 7.812500e-03 : f32
    %125 = vector.broadcast %cst_40 : f32 to vector<16x1xf32>
    %126 = arith.mulf %124, %125 : vector<16x1xf32>
    %127 = arith.mulf %121, %121 : vector<16x1xf32>
    %128 = arith.subf %126, %127 : vector<16x1xf32>
    %cst_41 = arith.constant 0.000000e+00 : f32
    %129 = vector.broadcast %cst_41 : f32 to vector<16x1xf32>
    %130 = arith.maximumf %128, %129 : vector<16x1xf32>
    %131 = vector.extract_strided_slice %1 {offsets = [0, 3], sizes = [16, 1], strides = [1, 1]} : vector<32x10xf32> to vector<16x1xf32>
    %132 = vector.extract_strided_slice %1 {offsets = [0, 8], sizes = [16, 1], strides = [1, 1]} : vector<32x10xf32> to vector<16x1xf32>
    %cst_42 = arith.constant 9.99999974E-6 : f32
    %133 = vector.broadcast %cst_42 : f32 to vector<16x1xf32>
    %134 = arith.addf %130, %133 : vector<16x1xf32>
    %135 = math.rsqrt %134 : vector<16x1xf32>
    %136 = arith.mulf %131, %135 : vector<16x1xf32>
    %137 = arith.mulf %121, %136 : vector<16x1xf32>
    %138 = arith.subf %132, %137 : vector<16x1xf32>
    %139 = vector.broadcast %136 : vector<16x1xf32> to vector<16x128xf32>
    %140 = arith.mulf %117, %139 : vector<16x128xf32>
    %141 = vector.broadcast %138 : vector<16x1xf32> to vector<16x128xf32>
    %142 = arith.addf %140, %141 : vector<16x128xf32>
    %cst_43 = arith.constant 0.000000e+00 : f32
    %143 = vector.broadcast %cst_43 : f32 to vector<16x128xf32>
    %144 = arith.maximumf %142, %143 : vector<16x128xf32>
    %c0_44 = arith.constant 0 : index
    %c0_45 = arith.constant 0 : index
    %145 = vector.load %arg5[%c0_44, %c0_45] : memref<32x16xf32, #tpu.memory_space<vmem>>, vector<32x16xf32>
    %cst_46 = arith.constant dense<0.000000e+00> : vector<32x128xf32>
    %146 = tpu.matmul %145, %144, %cst_46 {dimension_numbers = #tpu.dot_dimension_numbers<[1], [0], [0], [1], [0, 0, 1, 1], [], []>} : vector<32x16xf32>, vector<16x128xf32>, vector<32x128xf32> -> vector<32x128xf32>
    %cst_47 = arith.constant dense<0.000000e+00> : vector<32xf32>
    %147 = vector.multi_reduction <add>, %146, %cst_47 [1] : vector<32x128xf32> to vector<32xf32>
    %148 = vector.shape_cast %147 : vector<32xf32> to vector<32x1xf32>
    %cst_48 = arith.constant 7.812500e-03 : f32
    %149 = vector.broadcast %cst_48 : f32 to vector<32x1xf32>
    %150 = arith.mulf %148, %149 : vector<32x1xf32>
    %151 = arith.mulf %146, %146 : vector<32x128xf32>
    %cst_49 = arith.constant dense<0.000000e+00> : vector<32xf32>
    %152 = vector.multi_reduction <add>, %151, %cst_49 [1] : vector<32x128xf32> to vector<32xf32>
    %153 = vector.shape_cast %152 : vector<32xf32> to vector<32x1xf32>
    %cst_50 = arith.constant 7.812500e-03 : f32
    %154 = vector.broadcast %cst_50 : f32 to vector<32x1xf32>
    %155 = arith.mulf %153, %154 : vector<32x1xf32>
    %156 = arith.mulf %150, %150 : vector<32x1xf32>
    %157 = arith.subf %155, %156 : vector<32x1xf32>
    %cst_51 = arith.constant 0.000000e+00 : f32
    %158 = vector.broadcast %cst_51 : f32 to vector<32x1xf32>
    %159 = arith.maximumf %157, %158 : vector<32x1xf32>
    %160 = vector.extract_strided_slice %1 {offsets = [0, 4], sizes = [32, 1], strides = [1, 1]} : vector<32x10xf32> to vector<32x1xf32>
    %161 = vector.extract_strided_slice %1 {offsets = [0, 9], sizes = [32, 1], strides = [1, 1]} : vector<32x10xf32> to vector<32x1xf32>
    %cst_52 = arith.constant 9.99999974E-6 : f32
    %162 = vector.broadcast %cst_52 : f32 to vector<32x1xf32>
    %163 = arith.addf %159, %162 : vector<32x1xf32>
    %164 = math.rsqrt %163 : vector<32x1xf32>
    %165 = arith.mulf %160, %164 : vector<32x1xf32>
    %166 = arith.mulf %150, %165 : vector<32x1xf32>
    %167 = arith.subf %161, %166 : vector<32x1xf32>
    %168 = vector.broadcast %165 : vector<32x1xf32> to vector<32x128xf32>
    %169 = arith.mulf %146, %168 : vector<32x128xf32>
    %170 = vector.broadcast %167 : vector<32x1xf32> to vector<32x128xf32>
    %171 = arith.addf %169, %170 : vector<32x128xf32>
    %172 = arith.addf %171, %0 : vector<32x128xf32>
    %cst_53 = arith.constant 0.000000e+00 : f32
    %173 = vector.broadcast %cst_53 : f32 to vector<32x128xf32>
    %174 = arith.maximumf %172, %173 : vector<32x128xf32>
    %c0_54 = arith.constant 0 : index
    %c0_55 = arith.constant 0 : index
    %175 = vector.load %arg8[%c0_54, %c0_55] : memref<32x128xf32, #tpu.memory_space<vmem>>, vector<32x128xf32>
    tpu.vector_store %arg8[%c0_54, %c0_55], %174 {strides = array<i32>} : memref<32x128xf32, #tpu.memory_space<vmem>>, vector<32x128xf32>,
    return
  }
}

</mosaic_0001>

<llo_original>
// kernel: basic_block_pallas.1
$region0: #{basic_block_pallas.1}
  #allocation0 [shape = 'u32[]', space=smem, size = 0x4, offset = 0x4, fixed_abs, tag = 'smem constant byte address 0x4 - core index']
  #allocation1 [shape = 'u32[144,128]{1,0:T(1,128)}', space=vmem, size = 0x12000, scoped, tag = 'internal scratch']
  %s0 = inlined_call_operand.vmem [shape: f32[32,128], index: 0, kind: input, shape index: {}]
  %s1 = inlined_call_operand.vmem [shape: f32[16,32], index: 1, kind: input, shape index: {}]
  %s2 = inlined_call_operand.vmem [shape: f32[8,16], index: 2, kind: input, shape index: {}]
  %s3 = inlined_call_operand.vmem [shape: f32[16,24], index: 3, kind: input, shape index: {}]
  %s4 = inlined_call_operand.vmem [shape: f32[16,48], index: 4, kind: input, shape index: {}]
  %s5 = inlined_call_operand.vmem [shape: f32[32,16], index: 5, kind: input, shape index: {}]
  %s6 = inlined_call_operand.vmem [shape: f32[32,10], index: 6, kind: input, shape index: {}]
  %s7 = inlined_call_operand.vmem [shape: f32[4,128], index: 7, kind: input, shape index: {}]
  %s8 = inlined_call_operand.vmem [shape: f32[32,128], index: 8, kind: output, shape index: {}]
  %s9 = sld [smem:[#allocation0]]
  $region42: #{basic_block_pallas.1} parent=0
    _
  %s11 = ssub.s32 1, %s9
  %s12 = scalar_select 0, %s11, %s9
  // Predicated region
  $region2: #{basic_block_pallas.1} parent=0 // pred_check
    _
  $region3: #{basic_block_pallas.1} parent=0 // pred_check_branch
    %14 = sbr.rel (0) target = $region5
  $region4: #{basic_block_pallas.1} parent=0 // pred_region
    _
  $region5: #{basic_block_pallas.1} parent=0 // pred_fallthru
    _
  // Predicated region
  $region6: #{basic_block_pallas.1} parent=0 // pred_check
    _
  $region7: #{basic_block_pallas.1} parent=0 // pred_check_branch
    %16 = sbr.rel (0) target = $region9
  $region8: #{basic_block_pallas.1} parent=0 // pred_region
    _
  $region9: #{basic_block_pallas.1} parent=0 // pred_fallthru
    _
  // Predicated region
  $region10: #{basic_block_pallas.1} parent=0 // pred_check
    _
  $region11: #{basic_block_pallas.1} parent=0 // pred_check_branch
    %18 = sbr.rel (0) target = $region13
  $region12: #{basic_block_pallas.1} parent=0 // pred_region
    _
  $region13: #{basic_block_pallas.1} parent=0 // pred_fallthru
    _
  // Predicated region
  $region14: #{basic_block_pallas.1} parent=0 // pred_check
    _
  $region15: #{basic_block_pallas.1} parent=0 // pred_check_branch
    %20 = sbr.rel (0) target = $region17
  $region16: #{basic_block_pallas.1} parent=0 // pred_region
    _
  $region17: #{basic_block_pallas.1} parent=0 // pred_fallthru
    _
  // Predicated region
  $region18: #{basic_block_pallas.1} parent=0 // pred_check
    _
  $region19: #{basic_block_pallas.1} parent=0 // pred_check_branch
    %22 = sbr.rel (0) target = $region21
  $region20: #{basic_block_pallas.1} parent=0 // pred_region
    _
  $region21: #{basic_block_pallas.1} parent=0 // pred_fallthru
    _
  // Predicated region
  $region22: #{basic_block_pallas.1} parent=0 // pred_check
    _
  $region23: #{basic_block_pallas.1} parent=0 // pred_check_branch
    %24 = sbr.rel (0) target = $region25
  $region24: #{basic_block_pallas.1} parent=0 // pred_region
    _
  $region25: #{basic_block_pallas.1} parent=0 // pred_fallthru
    _
  // Predicated region
  $region26: #{basic_block_pallas.1} parent=0 // pred_check
    _
  $region27: #{basic_block_pallas.1} parent=0 // pred_check_branch
    %26 = sbr.rel (0) target = $region29
  $region28: #{basic_block_pallas.1} parent=0 // pred_region
    _
  $region29: #{basic_block_pallas.1} parent=0 // pred_fallthru
    _
  // Predicated region
  $region30: #{basic_block_pallas.1} parent=0 // pred_check
    _
  $region31: #{basic_block_pallas.1} parent=0 // pred_check_branch
    %28 = sbr.rel (0) target = $region33
  $region32: #{basic_block_pallas.1} parent=0 // pred_region
    _
  $region33: #{basic_block_pallas.1} parent=0 // pred_fallthru
    _
  %v29 = vld [vmem:[%s0] sm:$0xff]
  %v30 = vld [vmem:[%s0 + $0x8] sm:$0xff]
  %v31 = vld [vmem:[%s0 + $0x10] sm:$0xff]
  %v32 = vld [vmem:[%s0 + $0x18] sm:$0xff]
  %v33 = vld [vmem:[%s6] sm:$0xff]
  %v34 = vld [vmem:[%s6 + $0x8] sm:$0xff]
  %v35 = vld [vmem:[%s6 + $0x10] sm:$0xff]
  %v36 = vld [vmem:[%s6 + $0x18] sm:$0xff]
  %v37 = vld [vmem:[%s7] sm:$0xf]
  %v38 = vld [vmem:[%s1] sm:$0xff]
  %v39 = vld [vmem:[%s1 + $0x8] sm:$0xff]
  %vm40 = vcmask 261120
  %v42 = vsel %vm40, %v38, 0
  %v45 = vsel %vm40, %v39, 0
  %47 = vmatprep.subr.mxu0 0.0
  %48 = vmatpush1.msra.mxu0 0.0
  %49 = vmatprep.subr.mxu0 0.0
  %50 = vmatpush1.msra.mxu0 0.0
  %51 = vmatprep.subr.mxu0 0.0
  %52 = vmatpush1.msra.mxu0 0.0
  %53 = vmatprep.subr.mxu0 0.0
  %54 = vmatpush1.msra.mxu0 0.0
  %55 = vmatprep.subr.mxu0 0.0
  %56 = vmatpush1.msra.mxu0 0.0
  %57 = vmatprep.subr.mxu0 0.0
  %58 = vmatpush1.msra.mxu0 0.0
  %59 = vmatprep.subr.mxu0 0.0
  %60 = vmatpush1.msra.mxu0 0.0
  %61 = vmatprep.subr.mxu0 0.0
  %62 = vmatpush1.msra.mxu0 0.0
  %63 = vmatprep.subr.mxu0 0.0
  %64 = vmatpush1.msra.mxu0 0.0
  %65 = vmatprep.subr.mxu0 0.0
  %66 = vmatpush1.msra.mxu0 0.0
  %67 = vmatprep.subr.mxu0 0.0
  %68 = vmatpush1.msra.mxu0 0.0
  %69 = vmatprep.subr.mxu0 0.0
  %70 = vmatpush1.msra.mxu0 0.0
  %71 = vmatprep.subr.mxu0 0.0
  %72 = vmatpush1.msra.mxu0 %v32
  %73 = vmatprep.subr.mxu0 0.0
  %74 = vmatpush1.msra.mxu0 %v31
  %75 = vmatprep.subr.mxu0 0.0
  %76 = vmatpush1.msra.mxu0 %v30
  %77 = vmatprep.subr.mxu0 0.0
  %78 = vmatpush1.msra.mxu0 %v29
  %79 = vmatprep.subr.mxu0 0.0
  %80 = vmatpush2.msra.mxu0 0.0
  %81 = vmatprep.subr.mxu0 0.0
  %82 = vmatpush2.msra.mxu0 0.0
  %83 = vmatprep.subr.mxu0 0.0
  %84 = vmatpush2.msra.mxu0 0.0
  %85 = vmatprep.subr.mxu0 0.0
  %86 = vmatpush2.msra.mxu0 0.0
  %87 = vmatprep.subr.mxu0 0.0
  %88 = vmatpush2.msra.mxu0 0.0
  %89 = vmatprep.subr.mxu0 0.0
  %90 = vmatpush2.msra.mxu0 0.0
  %91 = vmatprep.subr.mxu0 0.0
  %92 = vmatpush2.msra.mxu0 0.0
  %93 = vmatprep.subr.mxu0 0.0
  %94 = vmatpush2.msra.mxu0 0.0
  %95 = vmatprep.subr.mxu0 0.0
  %96 = vmatpush2.msra.mxu0 0.0
  %97 = vmatprep.subr.mxu0 0.0
  %98 = vmatpush2.msra.mxu0 0.0
  %99 = vmatprep.subr.mxu0 0.0
  %100 = vmatpush2.msra.mxu0 0.0
  %101 = vmatprep.subr.mxu0 0.0
  %102 = vmatpush2.msra.mxu0 0.0
  %103 = vmatprep.subr.mxu0 0.0
  %104 = vmatpush2.msra.mxu0 0.0
  %105 = vmatprep.subr.mxu0 0.0
  %106 = vmatpush2.msra.mxu0 0.0
  %107 = vmatprep.subr.mxu0 0.0
  %108 = vmatpush2.msra.mxu0 0.0
  %109 = vmatprep.subr.mxu0 0.0
  %110 = vmatpush2.msra.mxu0 0.0
  %111 = vmatprep.mubr.f32.mxu0 0.0
  %112 = vmatmul.mubr.f32.gmra.mxu0 %v42
  %v113 = vpop.f32.mrf.mxu0
  %v114 = vadd.f32 0.0, %v113
  %v115 = vpop.f32.mrf.mxu0
  %116 = vmatprep.mubr.f32.mxu0 0.0
  %117 = vmatmul.mubr.f32.gmra.mxu0 %v45
  %v118 = vpop.f32.mrf.mxu0
  %v119 = vadd.f32 0.0, %v118
  %v120 = vpop.f32.mrf.mxu0
  %121 = vdwg.mxu0
  %122 = vadd.xlane.f32.xlu0 %v114
  %v123 = vpop.xlane.xlu0 %122
  %124 = vadd.xlane.f32.xlu0 %v119
  %v125 = vpop.xlane.xlu0 %124
  %v126 = vmul.f32 %v123, 0.0078125
  %v127 = vmul.f32 %v125, 0.0078125
  %v128 = vmul.f32 %v114, %v114
  %v129 = vmul.f32 %v119, %v119
  %130 = vadd.xlane.f32.xlu0 %v128
  %v131 = vpop.xlane.xlu0 %130
  %132 = vadd.xlane.f32.xlu0 %v129
  %v133 = vpop.xlane.xlu0 %132
  %v134 = vmul.f32 %v131, 0.0078125
  %v135 = vmul.f32 %v133, 0.0078125
  %v136 = vmul.f32 %v126, %v126
  %v137 = vmul.f32 %v127, %v127
  %v138 = vsub.f32 %v134, %v136
  %v139 = vsub.f32 %v135, %v137
  %v140 = vmax.f32 %v138, 0.0
  %v141 = vmax.f32 %v139, 0.0
  %v142 = vadd.f32 %v140, 1e-05
  %v143 = vadd.f32 %v141, 1e-05
  %v144 = vrsqrt.pop %v142
  %v145 = vrsqrt.pop %v143
  %v146 = vmul.f32 %v33, %v144
  %v147 = vmul.f32 %v34, %v145
  %v148 = vmul.f32 %v126, %v146
  %v149 = vmul.f32 %v127, %v147
  %152 = vrot.lane.b32.xlu0 %v148, 5
  %v153 = vpop.permute.xlu0 %152
  %154 = vrot.lane.b32.xlu0 %v149, 5
  %v155 = vpop.permute.xlu0 %154
  %v158 = vsub.f32 %v33, %v153
  %v159 = vsub.f32 %v34, %v155
  %161 = vset.pattern.permute.xlu0 0
  %162 = vperm.xlu0 %161, %v146
  %v163 = vpop.permute.xlu0 %162
  %166 = vset.pattern.permute.xlu0 0
  %167 = vperm.xlu0 %166, %v147
  %v168 = vpop.permute.xlu0 %167
  %v170 = vmul.f32 %v114, %v163
  %v171 = vmul.f32 %v119, %v168
  %173 = vset.pattern.permute.xlu0 5
  %174 = vperm.xlu0 %173, %v158
  %v175 = vpop.permute.xlu0 %174
  %178 = vset.pattern.permute.xlu0 5
  %179 = vperm.xlu0 %178, %v159
  %v180 = vpop.permute.xlu0 %179
  %v182 = vadd.f32 %v170, %v175
  %v183 = vadd.f32 %v171, %v180
  %v184 = vmax.f32 %v182, 0.0
  %v185 = vmax.f32 %v183, 0.0
  %v186 = vld [vmem:[%s2] sm:$0xff]
  %vm187 = vcmask 130048
  %v189 = vsel %vm187, %v186, 0
  %191 = vmatprep.subr.mxu0 0.0
  %192 = vmatpush1.msra.mxu0 0.0
  %193 = vmatprep.subr.mxu0 0.0
  %194 = vmatpush1.msra.mxu0 0.0
  %195 = vmatprep.subr.mxu0 0.0
  %196 = vmatpush1.msra.mxu0 0.0
  %197 = vmatprep.subr.mxu0 0.0
  %198 = vmatpush1.msra.mxu0 0.0
  %199 = vmatprep.subr.mxu0 0.0
  %200 = vmatpush1.msra.mxu0 0.0
  %201 = vmatprep.subr.mxu0 0.0
  %202 = vmatpush1.msra.mxu0 0.0
  %203 = vmatprep.subr.mxu0 0.0
  %204 = vmatpush1.msra.mxu0 0.0
  %205 = vmatprep.subr.mxu0 0.0
  %206 = vmatpush1.msra.mxu0 0.0
  %207 = vmatprep.subr.mxu0 0.0
  %208 = vmatpush1.msra.mxu0 0.0
  %209 = vmatprep.subr.mxu0 0.0
  %210 = vmatpush1.msra.mxu0 0.0
  %211 = vmatprep.subr.mxu0 0.0
  %212 = vmatpush1.msra.mxu0 0.0
  %213 = vmatprep.subr.mxu0 0.0
  %214 = vmatpush1.msra.mxu0 0.0
  %215 = vmatprep.subr.mxu0 0.0
  %216 = vmatpush1.msra.mxu0 0.0
  %217 = vmatprep.subr.mxu0 0.0
  %218 = vmatpush1.msra.mxu0 0.0
  %219 = vmatprep.subr.mxu0 0.0
  %220 = vmatpush1.msra.mxu0 %v185
  %221 = vmatprep.subr.mxu0 0.0
  %222 = vmatpush1.msra.mxu0 %v184
  %223 = vmatprep.subr.mxu0 0.0
  %224 = vmatpush2.msra.mxu0 0.0
  %225 = vmatprep.subr.mxu0 0.0
  %226 = vmatpush2.msra.mxu0 0.0
  %227 = vmatprep.subr.mxu0 0.0
  %228 = vmatpush2.msra.mxu0 0.0
  %229 = vmatprep.subr.mxu0 0.0
  %230 = vmatpush2.msra.mxu0 0.0
  %231 = vmatprep.subr.mxu0 0.0
  %232 = vmatpush2.msra.mxu0 0.0
  %233 = vmatprep.subr.mxu0 0.0
  %234 = vmatpush2.msra.mxu0 0.0
  %235 = vmatprep.subr.mxu0 0.0
  %236 = vmatpush2.msra.mxu0 0.0
  %237 = vmatprep.subr.mxu0 0.0
  %238 = vmatpush2.msra.mxu0 0.0
  %239 = vmatprep.subr.mxu0 0.0
  %240 = vmatpush2.msra.mxu0 0.0
  %241 = vmatprep.subr.mxu0 0.0
  %242 = vmatpush2.msra.mxu0 0.0
  %243 = vmatprep.subr.mxu0 0.0
  %244 = vmatpush2.msra.mxu0 0.0
  %245 = vmatprep.subr.mxu0 0.0
  %246 = vmatpush2.msra.mxu0 0.0
  %247 = vmatprep.subr.mxu0 0.0
  %248 = vmatpush2.msra.mxu0 0.0
  %249 = vmatprep.subr.mxu0 0.0
  %250 = vmatpush2.msra.mxu0 0.0
  %251 = vmatprep.subr.mxu0 0.0
  %252 = vmatpush2.msra.mxu0 0.0
  %253 = vmatprep.subr.mxu0 0.0
  %254 = vmatpush2.msra.mxu0 0.0
  %255 = vmatprep.mubr.f32.mxu0 0.0
  %256 = vmatmul.mubr.f32.gmra.mxu0 %v189
  %v257 = vpop.f32.mrf.mxu0
  %v258 = vadd.f32 0.0, %v257
  %v259 = vpop.f32.mrf.mxu0
  %260 = vdwg.mxu0
  %261 = vadd.xlane.f32.xlu0 %v258
  %v262 = vpop.xlane.xlu0 %261
  %v263 = vmul.f32 %v262, 0.0078125
  %v264 = vmul.f32 %v258, %v258
  %265 = vadd.xlane.f32.xlu0 %v264
  %v266 = vpop.xlane.xlu0 %265
  %v267 = vmul.f32 %v266, 0.0078125
  %v268 = vmul.f32 %v263, %v263
  %v269 = vsub.f32 %v267, %v268
  %v270 = vmax.f32 %v269, 0.0
  %v271 = vadd.f32 %v270, 1e-05
  %v272 = vrsqrt.pop %v271
  %v273 = vmul.f32 %v33, %v272
  %v274 = vmul.f32 %v263, %v273
  %276 = vrot.lane.b32.xlu0 %v274, 5
  %v277 = vpop.permute.xlu0 %276
  %v279 = vsub.f32 %v33, %v277
  %281 = vset.pattern.permute.xlu0 1
  %282 = vperm.xlu0 %281, %v273
  %v283 = vpop.permute.xlu0 %282
  %v285 = vmul.f32 %v258, %v283
  %287 = vset.pattern.permute.xlu0 6
  %288 = vperm.xlu0 %287, %v279
  %v289 = vpop.permute.xlu0 %288
  %v291 = vadd.f32 %v285, %v289
  %v292 = vmax.f32 %v291, 0.0
  %294 = vrot.lane.b32.xlu0 %v292, 1
  %v295 = vpop.permute.xlu0 %294
  %v297 = vlaneseq
  %v298 = vshrl.u32 %v297, 7
  %v299 = vsub.s32 0, %v298
  %v300 = vrot.slane %v37, %v299
  %v301 = vmul.f32 %v295, %v300
  %302 = vrot.lane.b32.xlu0 %v292, 127
  %v303 = vpop.permute.xlu0 %302
  %v305 = vlaneseq
  %v306 = vshrl.u32 %v305, 7
  %v307 = vsub.s32 1, %v306
  %v308 = vrot.slane %v37, %v307
  %v309 = vmul.f32 %v303, %v308
  %v310 = vld [vmem:[%s3] sm:$0xff]
  %v311 = vld [vmem:[%s3 + $0x8] sm:$0xff]
  %vm312 = vcmask 195584
  %v314 = vsel %vm312, %v310, 0
  %v317 = vsel %vm312, %v311, 0
  %319 = vmatprep.subr.mxu0 0.0
  %320 = vmatpush1.msra.mxu0 0.0
  %321 = vmatprep.subr.mxu0 0.0
  %322 = vmatpush1.msra.mxu0 0.0
  %323 = vmatprep.subr.mxu0 0.0
  %324 = vmatpush1.msra.mxu0 0.0
  %325 = vmatprep.subr.mxu0 0.0
  %326 = vmatpush1.msra.mxu0 0.0
  %327 = vmatprep.subr.mxu0 0.0
  %328 = vmatpush1.msra.mxu0 0.0
  %329 = vmatprep.subr.mxu0 0.0
  %330 = vmatpush1.msra.mxu0 0.0
  %331 = vmatprep.subr.mxu0 0.0
  %332 = vmatpush1.msra.mxu0 0.0
  %333 = vmatprep.subr.mxu0 0.0
  %334 = vmatpush1.msra.mxu0 0.0
  %335 = vmatprep.subr.mxu0 0.0
  %336 = vmatpush1.msra.mxu0 0.0
  %337 = vmatprep.subr.mxu0 0.0
  %338 = vmatpush1.msra.mxu0 0.0
  %339 = vmatprep.subr.mxu0 0.0
  %340 = vmatpush1.msra.mxu0 0.0
  %341 = vmatprep.subr.mxu0 0.0
  %342 = vmatpush1.msra.mxu0 0.0
  %343 = vmatprep.subr.mxu0 0.0
  %344 = vmatpush1.msra.mxu0 0.0
  %345 = vmatprep.subr.mxu0 0.0
  %346 = vmatpush1.msra.mxu0 %v309
  %347 = vmatprep.subr.mxu0 0.0
  %348 = vmatpush1.msra.mxu0 %v292
  %349 = vmatprep.subr.mxu0 0.0
  %350 = vmatpush1.msra.mxu0 %v301
  %351 = vmatprep.subr.mxu0 0.0
  %352 = vmatpush2.msra.mxu0 0.0
  %353 = vmatprep.subr.mxu0 0.0
  %354 = vmatpush2.msra.mxu0 0.0
  %355 = vmatprep.subr.mxu0 0.0
  %356 = vmatpush2.msra.mxu0 0.0
  %357 = vmatprep.subr.mxu0 0.0
  %358 = vmatpush2.msra.mxu0 0.0
  %359 = vmatprep.subr.mxu0 0.0
  %360 = vmatpush2.msra.mxu0 0.0
  %361 = vmatprep.subr.mxu0 0.0
  %362 = vmatpush2.msra.mxu0 0.0
  %363 = vmatprep.subr.mxu0 0.0
  %364 = vmatpush2.msra.mxu0 0.0
  %365 = vmatprep.subr.mxu0 0.0
  %366 = vmatpush2.msra.mxu0 0.0
  %367 = vmatprep.subr.mxu0 0.0
  %368 = vmatpush2.msra.mxu0 0.0
  %369 = vmatprep.subr.mxu0 0.0
  %370 = vmatpush2.msra.mxu0 0.0
  %371 = vmatprep.subr.mxu0 0.0
  %372 = vmatpush2.msra.mxu0 0.0
  %373 = vmatprep.subr.mxu0 0.0
  %374 = vmatpush2.msra.mxu0 0.0
  %375 = vmatprep.subr.mxu0 0.0
  %376 = vmatpush2.msra.mxu0 0.0
  %377 = vmatprep.subr.mxu0 0.0
  %378 = vmatpush2.msra.mxu0 0.0
  %379 = vmatprep.subr.mxu0 0.0
  %380 = vmatpush2.msra.mxu0 0.0
  %381 = vmatprep.subr.mxu0 0.0
  %382 = vmatpush2.msra.mxu0 0.0
  %383 = vmatprep.mubr.f32.mxu0 0.0
  %384 = vmatmul.mubr.f32.gmra.mxu0 %v314
  %v385 = vpop.f32.mrf.mxu0
  %v386 = vadd.f32 0.0, %v385
  %v387 = vpop.f32.mrf.mxu0
  %388 = vmatprep.mubr.f32.mxu0 0.0
  %389 = vmatmul.mubr.f32.gmra.mxu0 %v317
  %v390 = vpop.f32.mrf.mxu0
  %v391 = vadd.f32 0.0, %v390
  %v392 = vpop.f32.mrf.mxu0
  %393 = vdwg.mxu0
  %394 = vadd.xlane.f32.xlu0 %v386
  %v395 = vpop.xlane.xlu0 %394
  %396 = vadd.xlane.f32.xlu0 %v391
  %v397 = vpop.xlane.xlu0 %396
  %v398 = vmul.f32 %v395, 0.0078125
  %v399 = vmul.f32 %v397, 0.0078125
  %v400 = vmul.f32 %v386, %v386
  %v401 = vmul.f32 %v391, %v391
  %402 = vadd.xlane.f32.xlu0 %v400
  %v403 = vpop.xlane.xlu0 %402
  %404 = vadd.xlane.f32.xlu0 %v401
  %v405 = vpop.xlane.xlu0 %404
  %v406 = vmul.f32 %v403, 0.0078125
  %v407 = vmul.f32 %v405, 0.0078125
  %v408 = vmul.f32 %v398, %v398
  %v409 = vmul.f32 %v399, %v399
  %v410 = vsub.f32 %v406, %v408
  %v411 = vsub.f32 %v407, %v409
  %v412 = vmax.f32 %v410, 0.0
  %v413 = vmax.f32 %v411, 0.0
  %v414 = vadd.f32 %v412, 1e-05
  %v415 = vadd.f32 %v413, 1e-05
  %v416 = vrsqrt.pop %v414
  %v417 = vrsqrt.pop %v415
  %v418 = vmul.f32 %v33, %v416
  %v419 = vmul.f32 %v34, %v417
  %v420 = vmul.f32 %v398, %v418
  %v421 = vmul.f32 %v399, %v419
  %424 = vrot.lane.b32.xlu0 %v420, 5
  %v425 = vpop.permute.xlu0 %424
  %426 = vrot.lane.b32.xlu0 %v421, 5
  %v427 = vpop.permute.xlu0 %426
  %v430 = vsub.f32 %v33, %v425
  %v431 = vsub.f32 %v34, %v427
  %433 = vset.pattern.permute.xlu0 2
  %434 = vperm.xlu0 %433, %v418
  %v435 = vpop.permute.xlu0 %434
  %438 = vset.pattern.permute.xlu0 2
  %439 = vperm.xlu0 %438, %v419
  %v440 = vpop.permute.xlu0 %439
  %v442 = vmul.f32 %v386, %v435
  %v443 = vmul.f32 %v391, %v440
  %445 = vset.pattern.permute.xlu0 7
  %446 = vperm.xlu0 %445, %v430
  %v447 = vpop.permute.xlu0 %446
  %450 = vset.pattern.permute.xlu0 7
  %451 = vperm.xlu0 %450, %v431
  %v452 = vpop.permute.xlu0 %451
  %v454 = vadd.f32 %v442, %v447
  %v455 = vadd.f32 %v443, %v452
  %v456 = vmax.f32 %v454, 0.0
  %v457 = vmax.f32 %v455, 0.0
  %460 = vrot.lane.b32.xlu0 %v456, 8
  %v461 = vpop.permute.xlu0 %460
  %462 = vrot.lane.b32.xlu0 %v457, 8
  %v463 = vpop.permute.xlu0 %462
  %v466 = vlaneseq
  %v467 = vshrl.u32 %v466, 7
  %v468 = vsub.s32 2, %v467
  %v469 = vrot.slane %v37, %v468
  %v470 = vmul.f32 %v461, %v469
  %v471 = vmul.f32 %v463, %v469
  %472 = vrot.lane.b32.xlu0 %v456, 120
  %v473 = vpop.permute.xlu0 %472
  %474 = vrot.lane.b32.xlu0 %v457, 120
  %v475 = vpop.permute.xlu0 %474
  %v478 = vlaneseq
  %v479 = vshrl.u32 %v478, 7
  %v480 = vsub.s32 3, %v479
  %v481 = vrot.slane %v37, %v480
  %v482 = vmul.f32 %v473, %v481
  %v483 = vmul.f32 %v475, %v481
  %v484 = vld [vmem:[%s4] sm:$0xff]
  %v485 = vld [vmem:[%s4 + $0x8] sm:$0xff]
  %vm486 = vcmask 392192
  %v488 = vsel %vm486, %v484, 0
  %v491 = vsel %vm486, %v485, 0
  %493 = vmatprep.subr.mxu0 0.0
  %494 = vmatpush1.msra.mxu0 0.0
  %495 = vmatprep.subr.mxu0 0.0
  %496 = vmatpush1.msra.mxu0 0.0
  %497 = vmatprep.subr.mxu0 0.0
  %498 = vmatpush1.msra.mxu0 0.0
  %499 = vmatprep.subr.mxu0 0.0
  %500 = vmatpush1.msra.mxu0 0.0
  %501 = vmatprep.subr.mxu0 0.0
  %502 = vmatpush1.msra.mxu0 0.0
  %503 = vmatprep.subr.mxu0 0.0
  %504 = vmatpush1.msra.mxu0 0.0
  %505 = vmatprep.subr.mxu0 0.0
  %506 = vmatpush1.msra.mxu0 0.0
  %507 = vmatprep.subr.mxu0 0.0
  %508 = vmatpush1.msra.mxu0 0.0
  %509 = vmatprep.subr.mxu0 0.0
  %510 = vmatpush1.msra.mxu0 0.0
  %511 = vmatprep.subr.mxu0 0.0
  %512 = vmatpush1.msra.mxu0 0.0
  %513 = vmatprep.subr.mxu0 0.0
  %514 = vmatpush1.msra.mxu0 %v483
  %515 = vmatprep.subr.mxu0 0.0
  %516 = vmatpush1.msra.mxu0 %v482
  %517 = vmatprep.subr.mxu0 0.0
  %518 = vmatpush1.msra.mxu0 %v457
  %519 = vmatprep.subr.mxu0 0.0
  %520 = vmatpush1.msra.mxu0 %v456
  %521 = vmatprep.subr.mxu0 0.0
  %522 = vmatpush1.msra.mxu0 %v471
  %523 = vmatprep.subr.mxu0 0.0
  %524 = vmatpush1.msra.mxu0 %v470
  %525 = vmatprep.subr.mxu0 0.0
  %526 = vmatpush2.msra.mxu0 0.0
  %527 = vmatprep.subr.mxu0 0.0
  %528 = vmatpush2.msra.mxu0 0.0
  %529 = vmatprep.subr.mxu0 0.0
  %530 = vmatpush2.msra.mxu0 0.0
  %531 = vmatprep.subr.mxu0 0.0
  %532 = vmatpush2.msra.mxu0 0.0
  %533 = vmatprep.subr.mxu0 0.0
  %534 = vmatpush2.msra.mxu0 0.0
  %535 = vmatprep.subr.mxu0 0.0
  %536 = vmatpush2.msra.mxu0 0.0
  %537 = vmatprep.subr.mxu0 0.0
  %538 = vmatpush2.msra.mxu0 0.0
  %539 = vmatprep.subr.mxu0 0.0
  %540 = vmatpush2.msra.mxu0 0.0
  %541 = vmatprep.subr.mxu0 0.0
  %542 = vmatpush2.msra.mxu0 0.0
  %543 = vmatprep.subr.mxu0 0.0
  %544 = vmatpush2.msra.mxu0 0.0
  %545 = vmatprep.subr.mxu0 0.0
  %546 = vmatpush2.msra.mxu0 0.0
  %547 = vmatprep.subr.mxu0 0.0
  %548 = vmatpush2.msra.mxu0 0.0
  %549 = vmatprep.subr.mxu0 0.0
  %550 = vmatpush2.msra.mxu0 0.0
  %551 = vmatprep.subr.mxu0 0.0
  %552 = vmatpush2.msra.mxu0 0.0
  %553 = vmatprep.subr.mxu0 0.0
  %554 = vmatpush2.msra.mxu0 0.0
  %555 = vmatprep.subr.mxu0 0.0
  %556 = vmatpush2.msra.mxu0 0.0
  %557 = vmatprep.mubr.f32.mxu0 0.0
  %558 = vmatmul.mubr.f32.gmra.mxu0 %v488
  %v559 = vpop.f32.mrf.mxu0
  %v560 = vadd.f32 0.0, %v559
  %v561 = vpop.f32.mrf.mxu0
  %562 = vmatprep.mubr.f32.mxu0 0.0
  %563 = vmatmul.mubr.f32.gmra.mxu0 %v491
  %v564 = vpop.f32.mrf.mxu0
  %v565 = vadd.f32 0.0, %v564
  %v566 = vpop.f32.mrf.mxu0
  %567 = vdwg.mxu0
  %568 = vadd.xlane.f32.xlu0 %v560
  %v569 = vpop.xlane.xlu0 %568
  %570 = vadd.xlane.f32.xlu0 %v565
  %v571 = vpop.xlane.xlu0 %570
  %v572 = vmul.f32 %v569, 0.0078125
  %v573 = vmul.f32 %v571, 0.0078125
  %v574 = vmul.f32 %v560, %v560
  %v575 = vmul.f32 %v565, %v565
  %576 = vadd.xlane.f32.xlu0 %v574
  %v577 = vpop.xlane.xlu0 %576
  %578 = vadd.xlane.f32.xlu0 %v575
  %v579 = vpop.xlane.xlu0 %578
  %v580 = vmul.f32 %v577, 0.0078125
  %v581 = vmul.f32 %v579, 0.0078125
  %v582 = vmul.f32 %v572, %v572
  %v583 = vmul.f32 %v573, %v573
  %v584 = vsub.f32 %v580, %v582
  %v585 = vsub.f32 %v581, %v583
  %v586 = vmax.f32 %v584, 0.0
  %v587 = vmax.f32 %v585, 0.0
  %v588 = vadd.f32 %v586, 1e-05
  %v589 = vadd.f32 %v587, 1e-05
  %v590 = vrsqrt.pop %v588
  %v591 = vrsqrt.pop %v589
  %v592 = vmul.f32 %v33, %v590
  %v593 = vmul.f32 %v34, %v591
  %v594 = vmul.f32 %v572, %v592
  %v595 = vmul.f32 %v573, %v593
  %598 = vrot.lane.b32.xlu0 %v594, 5
  %v599 = vpop.permute.xlu0 %598
  %600 = vrot.lane.b32.xlu0 %v595, 5
  %v601 = vpop.permute.xlu0 %600
  %v604 = vsub.f32 %v33, %v599
  %v605 = vsub.f32 %v34, %v601
  %607 = vset.pattern.permute.xlu0 3
  %608 = vperm.xlu0 %607, %v592
  %v609 = vpop.permute.xlu0 %608
  %612 = vset.pattern.permute.xlu0 3
  %613 = vperm.xlu0 %612, %v593
  %v614 = vpop.permute.xlu0 %613
  %v616 = vmul.f32 %v560, %v609
  %v617 = vmul.f32 %v565, %v614
  %619 = vset.pattern.permute.xlu0 8
  %620 = vperm.xlu0 %619, %v604
  %v621 = vpop.permute.xlu0 %620
  %624 = vset.pattern.permute.xlu0 8
  %625 = vperm.xlu0 %624, %v605
  %v626 = vpop.permute.xlu0 %625
  %v628 = vadd.f32 %v616, %v621
  %v629 = vadd.f32 %v617, %v626
  %v630 = vmax.f32 %v628, 0.0
  %v631 = vmax.f32 %v629, 0.0
  %v632 = vld [vmem:[%s5] sm:$0xff]
  %v633 = vld [vmem:[%s5 + $0x8] sm:$0xff]
  %v634 = vld [vmem:[%s5 + $0x10] sm:$0xff]
  %v635 = vld [vmem:[%s5 + $0x18] sm:$0xff]
  %v637 = vsel %vm187, %v632, 0
  %v640 = vsel %vm187, %v633, 0
  %v643 = vsel %vm187, %v634, 0
  %v646 = vsel %vm187, %v635, 0
  %648 = vmatprep.subr.mxu0 0.0
  %649 = vmatpush1.msra.mxu0 0.0
  %650 = vmatprep.subr.mxu0 0.0
  %651 = vmatpush1.msra.mxu0 0.0
  %652 = vmatprep.subr.mxu0 0.0
  %653 = vmatpush1.msra.mxu0 0.0
  %654 = vmatprep.subr.mxu0 0.0
  %655 = vmatpush1.msra.mxu0 0.0
  %656 = vmatprep.subr.mxu0 0.0
  %657 = vmatpush1.msra.mxu0 0.0
  %658 = vmatprep.subr.mxu0 0.0
  %659 = vmatpush1.msra.mxu0 0.0
  %660 = vmatprep.subr.mxu0 0.0
  %661 = vmatpush1.msra.mxu0 0.0
  %662 = vmatprep.subr.mxu0 0.0
  %663 = vmatpush1.msra.mxu0 0.0
  %664 = vmatprep.subr.mxu0 0.0
  %665 = vmatpush1.msra.mxu0 0.0
  %666 = vmatprep.subr.mxu0 0.0
  %667 = vmatpush1.msra.mxu0 0.0
  %668 = vmatprep.subr.mxu0 0.0
  %669 = vmatpush1.msra.mxu0 0.0
  %670 = vmatprep.subr.mxu0 0.0
  %671 = vmatpush1.msra.mxu0 0.0
  %672 = vmatprep.subr.mxu0 0.0
  %673 = vmatpush1.msra.mxu0 0.0
  %674 = vmatprep.subr.mxu0 0.0
  %675 = vmatpush1.msra.mxu0 0.0
  %676 = vmatprep.subr.mxu0 0.0
  %677 = vmatpush1.msra.mxu0 %v631
  %678 = vmatprep.subr.mxu0 0.0
  %679 = vmatpush1.msra.mxu0 %v630
  %680 = vmatprep.subr.mxu0 0.0
  %681 = vmatpush2.msra.mxu0 0.0
  %682 = vmatprep.subr.mxu0 0.0
  %683 = vmatpush2.msra.mxu0 0.0
  %684 = vmatprep.subr.mxu0 0.0
  %685 = vmatpush2.msra.mxu0 0.0
  %686 = vmatprep.subr.mxu0 0.0
  %687 = vmatpush2.msra.mxu0 0.0
  %688 = vmatprep.subr.mxu0 0.0
  %689 = vmatpush2.msra.mxu0 0.0
  %690 = vmatprep.subr.mxu0 0.0
  %691 = vmatpush2.msra.mxu0 0.0
  %692 = vmatprep.subr.mxu0 0.0
  %693 = vmatpush2.msra.mxu0 0.0
  %694 = vmatprep.subr.mxu0 0.0
  %695 = vmatpush2.msra.mxu0 0.0
  %696 = vmatprep.subr.mxu0 0.0
  %697 = vmatpush2.msra.mxu0 0.0
  %698 = vmatprep.subr.mxu0 0.0
  %699 = vmatpush2.msra.mxu0 0.0
  %700 = vmatprep.subr.mxu0 0.0
  %701 = vmatpush2.msra.mxu0 0.0
  %702 = vmatprep.subr.mxu0 0.0
  %703 = vmatpush2.msra.mxu0 0.0
  %704 = vmatprep.subr.mxu0 0.0
  %705 = vmatpush2.msra.mxu0 0.0
  %706 = vmatprep.subr.mxu0 0.0
  %707 = vmatpush2.msra.mxu0 0.0
  %708 = vmatprep.subr.mxu0 0.0
  %709 = vmatpush2.msra.mxu0 0.0
  %710 = vmatprep.subr.mxu0 0.0
  %711 = vmatpush2.msra.mxu0 0.0
  %712 = vmatprep.mubr.f32.mxu0 0.0
  %713 = vmatmul.mubr.f32.gmra.mxu0 %v637
  %v714 = vpop.f32.mrf.mxu0
  %v715 = vadd.f32 0.0, %v714
  %v716 = vpop.f32.mrf.mxu0
  %717 = vmatprep.mubr.f32.mxu0 0.0
  %718 = vmatmul.mubr.f32.gmra.mxu0 %v640
  %v719 = vpop.f32.mrf.mxu0
  %v720 = vadd.f32 0.0, %v719
  %v721 = vpop.f32.mrf.mxu0
  %722 = vmatprep.mubr.f32.mxu0 0.0
  %723 = vmatmul.mubr.f32.gmra.mxu0 %v643
  %v724 = vpop.f32.mrf.mxu0
  %v725 = vadd.f32 0.0, %v724
  %v726 = vpop.f32.mrf.mxu0
  %727 = vmatprep.mubr.f32.mxu0 0.0
  %728 = vmatmul.mubr.f32.gmra.mxu0 %v646
  %v729 = vpop.f32.mrf.mxu0
  %v730 = vadd.f32 0.0, %v729
  %v731 = vpop.f32.mrf.mxu0
  %732 = vdwg.mxu0
  %733 = vadd.xlane.f32.xlu0 %v715
  %v734 = vpop.xlane.xlu0 %733
  %735 = vadd.xlane.f32.xlu0 %v720
  %v736 = vpop.xlane.xlu0 %735
  %737 = vadd.xlane.f32.xlu0 %v725
  %v738 = vpop.xlane.xlu0 %737
  %739 = vadd.xlane.f32.xlu0 %v730
  %v740 = vpop.xlane.xlu0 %739
  %v741 = vmul.f32 %v734, 0.0078125
  %v742 = vmul.f32 %v736, 0.0078125
  %v743 = vmul.f32 %v738, 0.0078125
  %v744 = vmul.f32 %v740, 0.0078125
  %v745 = vmul.f32 %v715, %v715
  %v746 = vmul.f32 %v720, %v720
  %v747 = vmul.f32 %v725, %v725
  %v748 = vmul.f32 %v730, %v730
  %749 = vadd.xlane.f32.xlu0 %v745
  %v750 = vpop.xlane.xlu0 %749
  %751 = vadd.xlane.f32.xlu0 %v746
  %v752 = vpop.xlane.xlu0 %751
  %753 = vadd.xlane.f32.xlu0 %v747
  %v754 = vpop.xlane.xlu0 %753
  %755 = vadd.xlane.f32.xlu0 %v748
  %v756 = vpop.xlane.xlu0 %755
  %v757 = vmul.f32 %v750, 0.0078125
  %v758 = vmul.f32 %v752, 0.0078125
  %v759 = vmul.f32 %v754, 0.0078125
  %v760 = vmul.f32 %v756, 0.0078125
  %v761 = vmul.f32 %v741, %v741
  %v762 = vmul.f32 %v742, %v742
  %v763 = vmul.f32 %v743, %v743
  %v764 = vmul.f32 %v744, %v744
  %v765 = vsub.f32 %v757, %v761
  %v766 = vsub.f32 %v758, %v762
  %v767 = vsub.f32 %v759, %v763
  %v768 = vsub.f32 %v760, %v764
  %v769 = vmax.f32 %v765, 0.0
  %v770 = vmax.f32 %v766, 0.0
  %v771 = vmax.f32 %v767, 0.0
  %v772 = vmax.f32 %v768, 0.0
  %v773 = vadd.f32 %v769, 1e-05
  %v774 = vadd.f32 %v770, 1e-05
  %v775 = vadd.f32 %v771, 1e-05
  %v776 = vadd.f32 %v772, 1e-05
  %v777 = vrsqrt.pop %v773
  %v778 = vrsqrt.pop %v774
  %v779 = vrsqrt.pop %v775
  %v780 = vrsqrt.pop %v776
  %v781 = vmul.f32 %v33, %v777
  %v782 = vmul.f32 %v34, %v778
  %v783 = vmul.f32 %v35, %v779
  %v784 = vmul.f32 %v36, %v780
  %v785 = vmul.f32 %v741, %v781
  %v786 = vmul.f32 %v742, %v782
  %v787 = vmul.f32 %v743, %v783
  %v788 = vmul.f32 %v744, %v784
  %793 = vrot.lane.b32.xlu0 %v785, 5
  %v794 = vpop.permute.xlu0 %793
  %795 = vrot.lane.b32.xlu0 %v786, 5
  %v796 = vpop.permute.xlu0 %795
  %797 = vrot.lane.b32.xlu0 %v787, 5
  %v798 = vpop.permute.xlu0 %797
  %799 = vrot.lane.b32.xlu0 %v788, 5
  %v800 = vpop.permute.xlu0 %799
  %v805 = vsub.f32 %v33, %v794
  %v806 = vsub.f32 %v34, %v796
  %v807 = vsub.f32 %v35, %v798
  %v808 = vsub.f32 %v36, %v800
  %810 = vset.pattern.permute.xlu0 4
  %811 = vperm.xlu0 %810, %v781
  %v812 = vpop.permute.xlu0 %811
  %815 = vset.pattern.permute.xlu0 4
  %816 = vperm.xlu0 %815, %v782
  %v817 = vpop.permute.xlu0 %816
  %820 = vset.pattern.permute.xlu0 4
  %821 = vperm.xlu0 %820, %v783
  %v822 = vpop.permute.xlu0 %821
  %825 = vset.pattern.permute.xlu0 4
  %826 = vperm.xlu0 %825, %v784
  %v827 = vpop.permute.xlu0 %826
  %v829 = vmul.f32 %v715, %v812
  %v830 = vmul.f32 %v720, %v817
  %v831 = vmul.f32 %v725, %v822
  %v832 = vmul.f32 %v730, %v827
  %834 = vset.pattern.permute.xlu0 9
  %835 = vperm.xlu0 %834, %v805
  %v836 = vpop.permute.xlu0 %835
  %839 = vset.pattern.permute.xlu0 9
  %840 = vperm.xlu0 %839, %v806
  %v841 = vpop.permute.xlu0 %840
  %844 = vset.pattern.permute.xlu0 9
  %845 = vperm.xlu0 %844, %v807
  %v846 = vpop.permute.xlu0 %845
  %849 = vset.pattern.permute.xlu0 9
  %850 = vperm.xlu0 %849, %v808
  %v851 = vpop.permute.xlu0 %850
  %v853 = vadd.f32 %v829, %v836
  %v854 = vadd.f32 %v830, %v841
  %v855 = vadd.f32 %v831, %v846
  %v856 = vadd.f32 %v832, %v851
  %v857 = vadd.f32 %v853, %v29
  %v858 = vadd.f32 %v854, %v30
  %v859 = vadd.f32 %v855, %v31
  %v860 = vadd.f32 %v856, %v32
  %v861 = vmax.f32 %v857, 0.0
  %v862 = vmax.f32 %v858, 0.0
  %v863 = vmax.f32 %v859, 0.0
  %v864 = vmax.f32 %v860, 0.0
  %865 = vst [vmem:[%s8] sm:$0xff] %v861
  %866 = vst [vmem:[%s8 + $0x8] sm:$0xff] %v862
  %867 = vst [vmem:[%s8 + $0x10] sm:$0xff] %v863
  %868 = vst [vmem:[%s8 + $0x18] sm:$0xff] %v864
  // Predicated region
  $region34: #{basic_block_pallas.1} parent=0 // pred_check
    _
  $region35: #{basic_block_pallas.1} parent=0 // pred_check_branch
    %870 = sbr.rel (0) target = $region37
  $region36: #{basic_block_pallas.1} parent=0 // pred_region
    _
  $region37: #{basic_block_pallas.1} parent=0 // pred_fallthru
    _
  // Predicated region
  $region38: #{basic_block_pallas.1} parent=0 // pred_check
    _
  $region39: #{basic_block_pallas.1} parent=0 // pred_check_branch
    %872 = sbr.rel (0) target = $region41
  $region40: #{basic_block_pallas.1} parent=0 // pred_region
    _
  $region41: #{basic_block_pallas.1} parent=0 // pred_fallthru
    _

</llo_original>
